<compile_context>
chip_gen: v6e
topology: v6e:2x2x1
jax: 0.10.0
libtpu: 0.0.40
codegen_flags: <defaults>
</compile_context>

<pallas_src>
import functools

import jax
import jax.numpy as jnp
from jax.experimental import pallas as pl
from jax.experimental.pallas import tpu as pltpu


def _round_up(x, m):
    return ((x + m - 1) // m) * m


def _sep_unit(x, mdw_ref, pw, pwb, g, b, *, mdw_off, c_pad, n_lanes, img_w):
    """One separable unit on a (c_pad, n_lanes) tile -> (c_out, n_lanes).

    x       : (c_pad, n_lanes) f32, lane index = n*H*W + h*W + w (pad rows = 0)
    mdw_ref : (9, *, n_lanes)  prefolded mask*weight depthwise table
    pw      : (c_out, c_pad)   pointwise 1x1 weights (zero-padded columns)
    pwb     : (c_out, 1)       pointwise bias (depthwise bias folded in)
    g, b    : (c_out, 1)       BN gamma / beta
    """
    # ---- depthwise 3x3 (padding=1): lane rolls * prefolded mask*weight ----
    acc = x * mdw_ref[4, mdw_off:mdw_off + c_pad, :]          # center tap
    for t in (0, 1, 2, 3, 5, 6, 7, 8):
        oi, oj = t // 3 - 1, t % 3 - 1
        s = oi * img_w + oj                                    # want x[q + s]
        shifted = pltpu.roll(x, (-s) % n_lanes, 1)             # jnp.roll sem.
        acc = acc + shifted * mdw_ref[t, mdw_off:mdw_off + c_pad, :]

    # ---- pointwise 1x1 conv on the MXU (VALU/XLU stay free for depthwise) ----
    y = jnp.dot(pw, acc, preferred_element_type=jnp.float32) + pwb

    # ---- ReLU ----
    y = jnp.maximum(y, 0.0)

    # ---- BatchNorm2d, train-mode batch stats, two-pass (no cancellation) ----
    inv_cnt = 1.0 / float(n_lanes)
    mean = jnp.sum(y, axis=1, keepdims=True) * inv_cnt
    cen = y - mean
    var = jnp.sum(cen * cen, axis=1, keepdims=True) * inv_cnt
    scale = g * jax.lax.rsqrt(var + 1e-5)
    return cen * scale + b


def _fused_sep_kernel(x_ref, mdw_ref, slab_ref, out_ref, xw_ref, *,
                      n_img, c_in, c_out, cp_in, cp_out, hw, img_w):
    n_lanes = n_img * hw

    # ---- transpose-free assembly: (N, C_in, HW) -> (cp_in, N*HW) in VMEM ----
    if cp_in > c_in:
        xw_ref[...] = jnp.zeros_like(xw_ref)       # zero the K-padding rows
    for n in range(n_img):
        xw_ref[0:c_in, n * hw:(n + 1) * hw] = x_ref[n]
    x = xw_ref[...]

    # ---- unpack the single parameter slab with static slices ----
    v0 = cp_in + cp_out
    pw1 = slab_ref[:, 0:cp_in]                      # (c_out, cp_in)
    pw2 = slab_ref[:, cp_in:v0]                     # (c_out, cp_out)
    pwb1 = slab_ref[:, v0 + 0:v0 + 1]
    g1 = slab_ref[:, v0 + 1:v0 + 2]
    b1 = slab_ref[:, v0 + 2:v0 + 3]
    pwb2 = slab_ref[:, v0 + 3:v0 + 4]
    g2 = slab_ref[:, v0 + 4:v0 + 5]
    b2 = slab_ref[:, v0 + 5:v0 + 6]

    y1 = _sep_unit(x, mdw_ref, pw1, pwb1, g1, b1, mdw_off=0, c_pad=cp_in,
                   n_lanes=n_lanes, img_w=img_w)
    if cp_out > c_out:                              # pad unit-2 K to sublanes
        y1 = jnp.concatenate(
            [y1, jnp.zeros((cp_out - c_out, n_lanes), jnp.float32)], axis=0)
    y2 = _sep_unit(y1, mdw_ref, pw2, pwb2, g2, b2, mdw_off=cp_in, c_pad=cp_out,
                   n_lanes=n_lanes, img_w=img_w)

    # ---- lane-dense stores back to (N, C_out, HW): free NCHW reshape outside
    for n in range(n_img):
        out_ref[n] = y2[:, n * hw:(n + 1) * hw]


def _make_tap_masks(n, h, w):
    """(9, n*h*w) f32 0/1 masks: tap t=(di*3+dj) valid where the shifted
    source pixel (y+di-1, x+dj-1) lies inside the image."""
    hw = h * w
    hh = jnp.arange(hw, dtype=jnp.int32) // w
    ww = jnp.arange(hw, dtype=jnp.int32) % w
    rows = []
    for t in range(9):
        oi, oj = t // 3 - 1, t % 3 - 1
        m = (hh + oi >= 0) & (hh + oi < h) & (ww + oj >= 0) & (ww + oj < w)
        rows.append(jnp.tile(m.astype(jnp.float32), (n,)))
    return jnp.stack(rows, axis=0)


def pack_params(params, n, h, w):
    """Offline packing: one mask*weight depthwise table + one parameter slab."""
    f32 = jnp.float32
    c_in = params["dw1"].shape[1]
    c_out = params["pw1"].shape[1]
    cp_in, cp_out = _round_up(c_in, 8), _round_up(c_out, 8)
    hw = h * w
    n_lanes = n * hw

    masks = _make_tap_masks(n, h, w)                        # (9, L)
    dw1 = params["dw1"][:, :, 0]                            # (9, c_in)
    dw2 = params["dw2"][:, :, 0]                            # (9, c_out)
    mdw = jnp.zeros((9, cp_in + cp_out, n_lanes), f32)
    mdw = mdw.at[:, :c_in, :].set(dw1[:, :, None] * masks[:, None, :])
    mdw = mdw.at[:, cp_in:cp_in + c_out, :].set(dw2[:, :, None] * masks[:, None, :])

    pw1 = params["pw1"][:, :, 0].T                          # (c_out, c_in)
    pw2 = params["pw2"][:, :, 0].T                          # (c_out, c_out)
    # fold depthwise bias through the (linear) pointwise conv
    pwb1f = params["pwb1"][:, 0] + pw1 @ params["dwb1"][:, 0]
    pwb2f = params["pwb2"][:, 0] + pw2 @ params["dwb2"][:, 0]

    s_cols = cp_in + cp_out + 6
    slab = jnp.zeros((c_out, s_cols), f32)
    slab = slab.at[:, :c_in].set(pw1)                       # K-padded with 0s
    slab = slab.at[:, cp_in:cp_in + c_out].set(pw2)
    v0 = cp_in + cp_out
    slab = slab.at[:, v0 + 0].set(pwb1f)
    slab = slab.at[:, v0 + 1].set(params["g1"][:, 0])
    slab = slab.at[:, v0 + 2].set(params["b1"][:, 0])
    slab = slab.at[:, v0 + 3].set(pwb2f)
    slab = slab.at[:, v0 + 4].set(params["g2"][:, 0])
    slab = slab.at[:, v0 + 5].set(params["b2"][:, 0])
    return {"mdw": mdw, "slab": slab}


def separable_module_forward(x_nchw, packed):
    """Equivalent of Module(in_ch, out_ch, separable=True).forward(x),
    with BatchNorm in training mode (default for a fresh module)."""
    n, c_in, h, w = x_nchw.shape
    mdw, slab = packed["mdw"], packed["slab"]
    c_out = slab.shape[0]
    cp_in = _round_up(c_in, 8)
    cp_out = slab.shape[1] - cp_in - 6
    hw = h * w
    n_lanes = n * hw
    assert mdw.shape == (9, cp_in + cp_out, n_lanes)

    # Free reshape (no XLA transpose kernel): NCHW -> (N, C, H*W).
    x3 = x_nchw.astype(jnp.float32).reshape(n, c_in, hw)

    vmem = pl.BlockSpec(memory_space=pltpu.MemorySpace.VMEM)
    kern = functools.partial(_fused_sep_kernel, n_img=n, c_in=c_in, c_out=c_out,
                             cp_in=cp_in, cp_out=cp_out, hw=hw, img_w=w)
    # Whole problem (<1 MiB) fits in VMEM -> single gridless call, 3 input DMAs.
    y = pl.pallas_call(
        kern,
        out_shape=jax.ShapeDtypeStruct((n, c_out, hw), jnp.float32),
        in_specs=[vmem, vmem, vmem],
        out_specs=vmem,
        scratch_shapes=[pltpu.VMEM((cp_in, n_lanes), jnp.float32)],
    )(x3, mdw, slab)

    # Free reshape back to NCHW.
    return y.reshape(n, c_out, h, w)


def init_params(key, in_channels, out_channels):
    ks = jax.random.split(key, 8)
    f32 = jnp.float32

    def u(k, shape, fan_in):
        bound = 1.0 / float(fan_in) ** 0.5
        return jax.random.uniform(k, shape, f32, -bound, bound)

    return {
        # depthwise 3x3 weights, tap-major: [di*3+dj, channel, 1]
        "dw1":  u(ks[0], (9, in_channels, 1), 9.0),
        "dwb1": u(ks[1], (in_channels, 1), 9.0),
        # pointwise 1x1 weights: [c_in, c_out, 1] (== torch weight[o, i] transposed)
        "pw1":  u(ks[2], (in_channels, out_channels, 1), in_channels),
        "pwb1": u(ks[3], (out_channels, 1), in_channels),
        "g1":   jnp.ones((out_channels, 1), f32),
        "b1":   jnp.zeros((out_channels, 1), f32),
        "dw2":  u(ks[4], (9, out_channels, 1), 9.0),
        "dwb2": u(ks[5], (out_channels, 1), 9.0),
        "pw2":  u(ks[6], (out_channels, out_channels, 1), out_channels),
        "pwb2": u(ks[7], (out_channels, 1), out_channels),
        "g2":   jnp.ones((out_channels, 1), f32),
        "b2":   jnp.zeros((out_channels, 1), f32),
    }


def reference_forward(x_nchw, params):
    """Pure-JAX (non-Pallas) reference of the same module, for validation."""
    def unit(x, dw, dwb, pw, pwb, g, b):
        _, _, h, w = x.shape
        xp = jnp.pad(x, ((0, 0), (0, 0), (1, 1), (1, 1)))
        acc = jnp.zeros_like(x)
        for t in range(9):
            di, dj = t // 3, t % 3
            acc = acc + xp[:, :, di:di + h, dj:dj + w] * dw[t, :, 0][None, :, None, None]
        acc = acc + dwb[:, 0][None, :, None, None]
        y = jnp.einsum("io,nihw->nohw", pw[:, :, 0], acc,
                       precision=jax.lax.Precision.HIGHEST)
        y = y + pwb[:, 0][None, :, None, None]
        y = jnp.maximum(y, 0.0)
        mean = jnp.mean(y, axis=(0, 2, 3), keepdims=True)
        var = jnp.mean(jnp.square(y - mean), axis=(0, 2, 3), keepdims=True)
        y = (y - mean) * jax.lax.rsqrt(var + 1e-5)
        return y * g[:, 0][None, :, None, None] + b[:, 0][None, :, None, None]

    y = unit(x_nchw.astype(jnp.float32), params["dw1"], params["dwb1"],
             params["pw1"], params["pwb1"], params["g1"], params["b1"])
    y = unit(y, params["dw2"], params["dwb2"], params["pw2"], params["pwb2"],
             params["g2"], params["b2"])
    return y


if __name__ == "__main__":
    key = jax.random.PRNGKey(0)
    k_x, k_p = jax.random.split(key)

    N, C_IN, H, W = 2, 4, 16, 16
    C_OUT = 8

    x = jax.random.normal(k_x, (N, C_IN, H, W), jnp.float32)   # NCHW like torch
    params = init_params(k_p, C_IN, C_OUT)
    packed = pack_params(params, N, H, W)                      # done once, offline

    out = jax.block_until_ready(jax.jit(separable_module_forward)(x, packed))

    assert out.shape == (N, C_OUT, H, W), out.shape
    assert bool(jnp.all(jnp.isfinite(out)))

    ref = jax.block_until_ready(jax.jit(reference_forward)(x, params))
    max_err = float(jnp.max(jnp.abs(out - ref)))
    assert jnp.allclose(out, ref, rtol=5e-3, atol=5e-3), max_err

    print("KERNEL_OK")
</pallas_src>

<mosaic_0001>
module attributes {stable_mosaic.version = 11 : i64} {
  func.func @_fused_sep_kernel(%arg0: memref<2x4x256xf32, #tpu.memory_space<vmem>>, %arg1: memref<9x16x512xf32, #tpu.memory_space<vmem>>, %arg2: memref<8x22xf32, #tpu.memory_space<vmem>>, %arg3: memref<2x8x256xf32, #tpu.memory_space<vmem>>, %arg4: memref<8x512xf32, #tpu.memory_space<vmem>>) attributes {dimension_semantics = [], scalar_prefetch = 0 : i64, scratch_operands = 1 : i64, tpu.core_type = #tpu.core_type<tc>} {
    %cst = arith.constant 0.000000e+00 : f32
    %0 = vector.broadcast %cst : f32 to vector<8x512xf32>
    %c0 = arith.constant 0 : index
    %c0_0 = arith.constant 0 : index
    %1 = vector.load %arg4[%c0, %c0_0] : memref<8x512xf32, #tpu.memory_space<vmem>>, vector<8x512xf32>
    tpu.vector_store %arg4[%c0, %c0_0], %0 {strides = array<i32>} : memref<8x512xf32, #tpu.memory_space<vmem>>, vector<8x512xf32>,
    %c0_1 = arith.constant 0 : index
    %c0_2 = arith.constant 0 : index
    %c0_3 = arith.constant 0 : index
    %2 = vector.load %arg0[%c0_1, %c0_2, %c0_3] : memref<2x4x256xf32, #tpu.memory_space<vmem>>, vector<1x4x256xf32>
    %3 = vector.shape_cast %2 : vector<1x4x256xf32> to vector<4x256xf32>
    %c0_4 = arith.constant 0 : index
    %c0_5 = arith.constant 0 : index
    %4 = vector.load %arg4[%c0_4, %c0_5] : memref<8x512xf32, #tpu.memory_space<vmem>>, vector<4x256xf32>
    tpu.vector_store %arg4[%c0_4, %c0_5], %3 {strides = array<i32>} : memref<8x512xf32, #tpu.memory_space<vmem>>, vector<4x256xf32>,
    %c1 = arith.constant 1 : index
    %c0_6 = arith.constant 0 : index
    %c0_7 = arith.constant 0 : index
    %5 = vector.load %arg0[%c1, %c0_6, %c0_7] : memref<2x4x256xf32, #tpu.memory_space<vmem>>, vector<1x4x256xf32>
    %6 = vector.shape_cast %5 : vector<1x4x256xf32> to vector<4x256xf32>
    %c0_8 = arith.constant 0 : index
    %c256 = arith.constant 256 : index
    %7 = vector.load %arg4[%c0_8, %c256] : memref<8x512xf32, #tpu.memory_space<vmem>>, vector<4x256xf32>
    tpu.vector_store %arg4[%c0_8, %c256], %6 {strides = array<i32>} : memref<8x512xf32, #tpu.memory_space<vmem>>, vector<4x256xf32>,
    %c0_9 = arith.constant 0 : index
    %c0_10 = arith.constant 0 : index
    %8 = vector.load %arg4[%c0_9, %c0_10] : memref<8x512xf32, #tpu.memory_space<vmem>>, vector<8x512xf32>
    %c0_11 = arith.constant 0 : index
    %c0_12 = arith.constant 0 : index
    %9 = vector.load %arg2[%c0_11, %c0_12] : memref<8x22xf32, #tpu.memory_space<vmem>>, vector<8x8xf32>
    %c0_13 = arith.constant 0 : index
    %c8 = arith.constant 8 : index
    %10 = vector.load %arg2[%c0_13, %c8] : memref<8x22xf32, #tpu.memory_space<vmem>>, vector<8x8xf32>
    %c0_14 = arith.constant 0 : index
    %c16 = arith.constant 16 : index
    %11 = vector.load %arg2[%c0_14, %c16] : memref<8x22xf32, #tpu.memory_space<vmem>>, vector<8x1xf32>
    %c0_15 = arith.constant 0 : index
    %c17 = arith.constant 17 : index
    %12 = vector.load %arg2[%c0_15, %c17] : memref<8x22xf32, #tpu.memory_space<vmem>>, vector<8x1xf32>
    %c0_16 = arith.constant 0 : index
    %c18 = arith.constant 18 : index
    %13 = vector.load %arg2[%c0_16, %c18] : memref<8x22xf32, #tpu.memory_space<vmem>>, vector<8x1xf32>
    %c0_17 = arith.constant 0 : index
    %c19 = arith.constant 19 : index
    %14 = vector.load %arg2[%c0_17, %c19] : memref<8x22xf32, #tpu.memory_space<vmem>>, vector<8x1xf32>
    %c0_18 = arith.constant 0 : index
    %c20 = arith.constant 20 : index
    %15 = vector.load %arg2[%c0_18, %c20] : memref<8x22xf32, #tpu.memory_space<vmem>>, vector<8x1xf32>
    %c0_19 = arith.constant 0 : index
    %c21 = arith.constant 21 : index
    %16 = vector.load %arg2[%c0_19, %c21] : memref<8x22xf32, #tpu.memory_space<vmem>>, vector<8x1xf32>
    %c4 = arith.constant 4 : index
    %c0_20 = arith.constant 0 : index
    %c0_21 = arith.constant 0 : index
    %17 = vector.load %arg1[%c4, %c0_20, %c0_21] : memref<9x16x512xf32, #tpu.memory_space<vmem>>, vector<1x8x512xf32>
    %18 = vector.shape_cast %17 : vector<1x8x512xf32> to vector<8x512xf32>
    %19 = arith.mulf %8, %18 : vector<8x512xf32>
    %c17_i32 = arith.constant 17 : i32
    %20 = tpu.dynamic_rotate %8 by %c17_i32 dim 1 : vector<8x512xf32>, i32 -> vector<8x512xf32>
    %c0_22 = arith.constant 0 : index
    %c0_23 = arith.constant 0 : index
    %c0_24 = arith.constant 0 : index
    %21 = vector.load %arg1[%c0_22, %c0_23, %c0_24] : memref<9x16x512xf32, #tpu.memory_space<vmem>>, vector<1x8x512xf32>
    %22 = vector.shape_cast %21 : vector<1x8x512xf32> to vector<8x512xf32>
    %23 = arith.mulf %20, %22 : vector<8x512xf32>
    %24 = arith.addf %19, %23 : vector<8x512xf32>
    %c16_i32 = arith.constant 16 : i32
    %25 = tpu.dynamic_rotate %8 by %c16_i32 dim 1 : vector<8x512xf32>, i32 -> vector<8x512xf32>
    %c1_25 = arith.constant 1 : index
    %c0_26 = arith.constant 0 : index
    %c0_27 = arith.constant 0 : index
    %26 = vector.load %arg1[%c1_25, %c0_26, %c0_27] : memref<9x16x512xf32, #tpu.memory_space<vmem>>, vector<1x8x512xf32>
    %27 = vector.shape_cast %26 : vector<1x8x512xf32> to vector<8x512xf32>
    %28 = arith.mulf %25, %27 : vector<8x512xf32>
    %29 = arith.addf %24, %28 : vector<8x512xf32>
    %c15_i32 = arith.constant 15 : i32
    %30 = tpu.dynamic_rotate %8 by %c15_i32 dim 1 : vector<8x512xf32>, i32 -> vector<8x512xf32>
    %c2 = arith.constant 2 : index
    %c0_28 = arith.constant 0 : index
    %c0_29 = arith.constant 0 : index
    %31 = vector.load %arg1[%c2, %c0_28, %c0_29] : memref<9x16x512xf32, #tpu.memory_space<vmem>>, vector<1x8x512xf32>
    %32 = vector.shape_cast %31 : vector<1x8x512xf32> to vector<8x512xf32>
    %33 = arith.mulf %30, %32 : vector<8x512xf32>
    %34 = arith.addf %29, %33 : vector<8x512xf32>
    %c1_i32 = arith.constant 1 : i32
    %35 = tpu.dynamic_rotate %8 by %c1_i32 dim 1 : vector<8x512xf32>, i32 -> vector<8x512xf32>
    %c3 = arith.constant 3 : index
    %c0_30 = arith.constant 0 : index
    %c0_31 = arith.constant 0 : index
    %36 = vector.load %arg1[%c3, %c0_30, %c0_31] : memref<9x16x512xf32, #tpu.memory_space<vmem>>, vector<1x8x512xf32>
    %37 = vector.shape_cast %36 : vector<1x8x512xf32> to vector<8x512xf32>
    %38 = arith.mulf %35, %37 : vector<8x512xf32>
    %39 = arith.addf %34, %38 : vector<8x512xf32>
    %c511_i32 = arith.constant 511 : i32
    %40 = tpu.dynamic_rotate %8 by %c511_i32 dim 1 : vector<8x512xf32>, i32 -> vector<8x512xf32>
    %c5 = arith.constant 5 : index
    %c0_32 = arith.constant 0 : index
    %c0_33 = arith.constant 0 : index
    %41 = vector.load %arg1[%c5, %c0_32, %c0_33] : memref<9x16x512xf32, #tpu.memory_space<vmem>>, vector<1x8x512xf32>
    %42 = vector.shape_cast %41 : vector<1x8x512xf32> to vector<8x512xf32>
    %43 = arith.mulf %40, %42 : vector<8x512xf32>
    %44 = arith.addf %39, %43 : vector<8x512xf32>
    %c497_i32 = arith.constant 497 : i32
    %45 = tpu.dynamic_rotate %8 by %c497_i32 dim 1 : vector<8x512xf32>, i32 -> vector<8x512xf32>
    %c6 = arith.constant 6 : index
    %c0_34 = arith.constant 0 : index
    %c0_35 = arith.constant 0 : index
    %46 = vector.load %arg1[%c6, %c0_34, %c0_35] : memref<9x16x512xf32, #tpu.memory_space<vmem>>, vector<1x8x512xf32>
    %47 = vector.shape_cast %46 : vector<1x8x512xf32> to vector<8x512xf32>
    %48 = arith.mulf %45, %47 : vector<8x512xf32>
    %49 = arith.addf %44, %48 : vector<8x512xf32>
    %c496_i32 = arith.constant 496 : i32
    %50 = tpu.dynamic_rotate %8 by %c496_i32 dim 1 : vector<8x512xf32>, i32 -> vector<8x512xf32>
    %c7 = arith.constant 7 : index
    %c0_36 = arith.constant 0 : index
    %c0_37 = arith.constant 0 : index
    %51 = vector.load %arg1[%c7, %c0_36, %c0_37] : memref<9x16x512xf32, #tpu.memory_space<vmem>>, vector<1x8x512xf32>
    %52 = vector.shape_cast %51 : vector<1x8x512xf32> to vector<8x512xf32>
    %53 = arith.mulf %50, %52 : vector<8x512xf32>
    %54 = arith.addf %49, %53 : vector<8x512xf32>
    %c495_i32 = arith.constant 495 : i32
    %55 = tpu.dynamic_rotate %8 by %c495_i32 dim 1 : vector<8x512xf32>, i32 -> vector<8x512xf32>
    %c8_38 = arith.constant 8 : index
    %c0_39 = arith.constant 0 : index
    %c0_40 = arith.constant 0 : index
    %56 = vector.load %arg1[%c8_38, %c0_39, %c0_40] : memref<9x16x512xf32, #tpu.memory_space<vmem>>, vector<1x8x512xf32>
    %57 = vector.shape_cast %56 : vector<1x8x512xf32> to vector<8x512xf32>
    %58 = arith.mulf %55, %57 : vector<8x512xf32>
    %59 = arith.addf %54, %58 : vector<8x512xf32>
    %cst_41 = arith.constant dense<0.000000e+00> : vector<8x512xf32>
    %60 = tpu.matmul %9, %59, %cst_41 {dimension_numbers = #tpu.dot_dimension_numbers<[1], [0], [0], [1], [0, 0, 1, 1], [], []>} : vector<8x8xf32>, vector<8x512xf32>, vector<8x512xf32> -> vector<8x512xf32>
    %61 = vector.broadcast %11 : vector<8x1xf32> to vector<8x512xf32>
    %62 = arith.addf %60, %61 : vector<8x512xf32>
    %cst_42 = arith.constant 0.000000e+00 : f32
    %63 = vector.broadcast %cst_42 : f32 to vector<8x512xf32>
    %64 = arith.maximumf %62, %63 : vector<8x512xf32>
    %cst_43 = arith.constant dense<0.000000e+00> : vector<8xf32>
    %65 = vector.multi_reduction <add>, %64, %cst_43 [1] : vector<8x512xf32> to vector<8xf32>
    %66 = vector.shape_cast %65 : vector<8xf32> to vector<8x1xf32>
    %cst_44 = arith.constant 0.001953125 : f32
    %67 = vector.broadcast %cst_44 : f32 to vector<8x1xf32>
    %68 = arith.mulf %66, %67 : vector<8x1xf32>
    %69 = vector.broadcast %68 : vector<8x1xf32> to vector<8x512xf32>
    %70 = arith.subf %64, %69 : vector<8x512xf32>
    %71 = arith.mulf %70, %70 : vector<8x512xf32>
    %cst_45 = arith.constant dense<0.000000e+00> : vector<8xf32>
    %72 = vector.multi_reduction <add>, %71, %cst_45 [1] : vector<8x512xf32> to vector<8xf32>
    %73 = vector.shape_cast %72 : vector<8xf32> to vector<8x1xf32>
    %cst_46 = arith.constant 0.001953125 : f32
    %74 = vector.broadcast %cst_46 : f32 to vector<8x1xf32>
    %75 = arith.mulf %73, %74 : vector<8x1xf32>
    %cst_47 = arith.constant 9.99999974E-6 : f32
    %76 = vector.broadcast %cst_47 : f32 to vector<8x1xf32>
    %77 = arith.addf %75, %76 : vector<8x1xf32>
    %78 = math.rsqrt %77 : vector<8x1xf32>
    %79 = arith.mulf %12, %78 : vector<8x1xf32>
    %80 = vector.broadcast %79 : vector<8x1xf32> to vector<8x512xf32>
    %81 = arith.mulf %70, %80 : vector<8x512xf32>
    %82 = vector.broadcast %13 : vector<8x1xf32> to vector<8x512xf32>
    %83 = arith.addf %81, %82 : vector<8x512xf32>
    %c4_48 = arith.constant 4 : index
    %c8_49 = arith.constant 8 : index
    %c0_50 = arith.constant 0 : index
    %84 = vector.load %arg1[%c4_48, %c8_49, %c0_50] : memref<9x16x512xf32, #tpu.memory_space<vmem>>, vector<1x8x512xf32>
    %85 = vector.shape_cast %84 : vector<1x8x512xf32> to vector<8x512xf32>
    %86 = arith.mulf %83, %85 : vector<8x512xf32>
    %c17_i32_51 = arith.constant 17 : i32
    %87 = tpu.dynamic_rotate %83 by %c17_i32_51 dim 1 : vector<8x512xf32>, i32 -> vector<8x512xf32>
    %c0_52 = arith.constant 0 : index
    %c8_53 = arith.constant 8 : index
    %c0_54 = arith.constant 0 : index
    %88 = vector.load %arg1[%c0_52, %c8_53, %c0_54] : memref<9x16x512xf32, #tpu.memory_space<vmem>>, vector<1x8x512xf32>
    %89 = vector.shape_cast %88 : vector<1x8x512xf32> to vector<8x512xf32>
    %90 = arith.mulf %87, %89 : vector<8x512xf32>
    %91 = arith.addf %86, %90 : vector<8x512xf32>
    %c16_i32_55 = arith.constant 16 : i32
    %92 = tpu.dynamic_rotate %83 by %c16_i32_55 dim 1 : vector<8x512xf32>, i32 -> vector<8x512xf32>
    %c1_56 = arith.constant 1 : index
    %c8_57 = arith.constant 8 : index
    %c0_58 = arith.constant 0 : index
    %93 = vector.load %arg1[%c1_56, %c8_57, %c0_58] : memref<9x16x512xf32, #tpu.memory_space<vmem>>, vector<1x8x512xf32>
    %94 = vector.shape_cast %93 : vector<1x8x512xf32> to vector<8x512xf32>
    %95 = arith.mulf %92, %94 : vector<8x512xf32>
    %96 = arith.addf %91, %95 : vector<8x512xf32>
    %c15_i32_59 = arith.constant 15 : i32
    %97 = tpu.dynamic_rotate %83 by %c15_i32_59 dim 1 : vector<8x512xf32>, i32 -> vector<8x512xf32>
    %c2_60 = arith.constant 2 : index
    %c8_61 = arith.constant 8 : index
    %c0_62 = arith.constant 0 : index
    %98 = vector.load %arg1[%c2_60, %c8_61, %c0_62] : memref<9x16x512xf32, #tpu.memory_space<vmem>>, vector<1x8x512xf32>
    %99 = vector.shape_cast %98 : vector<1x8x512xf32> to vector<8x512xf32>
    %100 = arith.mulf %97, %99 : vector<8x512xf32>
    %101 = arith.addf %96, %100 : vector<8x512xf32>
    %c1_i32_63 = arith.constant 1 : i32
    %102 = tpu.dynamic_rotate %83 by %c1_i32_63 dim 1 : vector<8x512xf32>, i32 -> vector<8x512xf32>
    %c3_64 = arith.constant 3 : index
    %c8_65 = arith.constant 8 : index
    %c0_66 = arith.constant 0 : index
    %103 = vector.load %arg1[%c3_64, %c8_65, %c0_66] : memref<9x16x512xf32, #tpu.memory_space<vmem>>, vector<1x8x512xf32>
    %104 = vector.shape_cast %103 : vector<1x8x512xf32> to vector<8x512xf32>
    %105 = arith.mulf %102, %104 : vector<8x512xf32>
    %106 = arith.addf %101, %105 : vector<8x512xf32>
    %c511_i32_67 = arith.constant 511 : i32
    %107 = tpu.dynamic_rotate %83 by %c511_i32_67 dim 1 : vector<8x512xf32>, i32 -> vector<8x512xf32>
    %c5_68 = arith.constant 5 : index
    %c8_69 = arith.constant 8 : index
    %c0_70 = arith.constant 0 : index
    %108 = vector.load %arg1[%c5_68, %c8_69, %c0_70] : memref<9x16x512xf32, #tpu.memory_space<vmem>>, vector<1x8x512xf32>
    %109 = vector.shape_cast %108 : vector<1x8x512xf32> to vector<8x512xf32>
    %110 = arith.mulf %107, %109 : vector<8x512xf32>
    %111 = arith.addf %106, %110 : vector<8x512xf32>
    %c497_i32_71 = arith.constant 497 : i32
    %112 = tpu.dynamic_rotate %83 by %c497_i32_71 dim 1 : vector<8x512xf32>, i32 -> vector<8x512xf32>
    %c6_72 = arith.constant 6 : index
    %c8_73 = arith.constant 8 : index
    %c0_74 = arith.constant 0 : index
    %113 = vector.load %arg1[%c6_72, %c8_73, %c0_74] : memref<9x16x512xf32, #tpu.memory_space<vmem>>, vector<1x8x512xf32>
    %114 = vector.shape_cast %113 : vector<1x8x512xf32> to vector<8x512xf32>
    %115 = arith.mulf %112, %114 : vector<8x512xf32>
    %116 = arith.addf %111, %115 : vector<8x512xf32>
    %c496_i32_75 = arith.constant 496 : i32
    %117 = tpu.dynamic_rotate %83 by %c496_i32_75 dim 1 : vector<8x512xf32>, i32 -> vector<8x512xf32>
    %c7_76 = arith.constant 7 : index
    %c8_77 = arith.constant 8 : index
    %c0_78 = arith.constant 0 : index
    %118 = vector.load %arg1[%c7_76, %c8_77, %c0_78] : memref<9x16x512xf32, #tpu.memory_space<vmem>>, vector<1x8x512xf32>
    %119 = vector.shape_cast %118 : vector<1x8x512xf32> to vector<8x512xf32>
    %120 = arith.mulf %117, %119 : vector<8x512xf32>
    %121 = arith.addf %116, %120 : vector<8x512xf32>
    %c495_i32_79 = arith.constant 495 : i32
    %122 = tpu.dynamic_rotate %83 by %c495_i32_79 dim 1 : vector<8x512xf32>, i32 -> vector<8x512xf32>
    %c8_80 = arith.constant 8 : index
    %c8_81 = arith.constant 8 : index
    %c0_82 = arith.constant 0 : index
    %123 = vector.load %arg1[%c8_80, %c8_81, %c0_82] : memref<9x16x512xf32, #tpu.memory_space<vmem>>, vector<1x8x512xf32>
    %124 = vector.shape_cast %123 : vector<1x8x512xf32> to vector<8x512xf32>
    %125 = arith.mulf %122, %124 : vector<8x512xf32>
    %126 = arith.addf %121, %125 : vector<8x512xf32>
    %cst_83 = arith.constant dense<0.000000e+00> : vector<8x512xf32>
    %127 = tpu.matmul %10, %126, %cst_83 {dimension_numbers = #tpu.dot_dimension_numbers<[1], [0], [0], [1], [0, 0, 1, 1], [], []>} : vector<8x8xf32>, vector<8x512xf32>, vector<8x512xf32> -> vector<8x512xf32>
    %128 = vector.broadcast %14 : vector<8x1xf32> to vector<8x512xf32>
    %129 = arith.addf %127, %128 : vector<8x512xf32>
    %cst_84 = arith.constant 0.000000e+00 : f32
    %130 = vector.broadcast %cst_84 : f32 to vector<8x512xf32>
    %131 = arith.maximumf %129, %130 : vector<8x512xf32>
    %cst_85 = arith.constant dense<0.000000e+00> : vector<8xf32>
    %132 = vector.multi_reduction <add>, %131, %cst_85 [1] : vector<8x512xf32> to vector<8xf32>
    %133 = vector.shape_cast %132 : vector<8xf32> to vector<8x1xf32>
    %cst_86 = arith.constant 0.001953125 : f32
    %134 = vector.broadcast %cst_86 : f32 to vector<8x1xf32>
    %135 = arith.mulf %133, %134 : vector<8x1xf32>
    %136 = vector.broadcast %135 : vector<8x1xf32> to vector<8x512xf32>
    %137 = arith.subf %131, %136 : vector<8x512xf32>
    %138 = arith.mulf %137, %137 : vector<8x512xf32>
    %cst_87 = arith.constant dense<0.000000e+00> : vector<8xf32>
    %139 = vector.multi_reduction <add>, %138, %cst_87 [1] : vector<8x512xf32> to vector<8xf32>
    %140 = vector.shape_cast %139 : vector<8xf32> to vector<8x1xf32>
    %cst_88 = arith.constant 0.001953125 : f32
    %141 = vector.broadcast %cst_88 : f32 to vector<8x1xf32>
    %142 = arith.mulf %140, %141 : vector<8x1xf32>
    %cst_89 = arith.constant 9.99999974E-6 : f32
    %143 = vector.broadcast %cst_89 : f32 to vector<8x1xf32>
    %144 = arith.addf %142, %143 : vector<8x1xf32>
    %145 = math.rsqrt %144 : vector<8x1xf32>
    %146 = arith.mulf %15, %145 : vector<8x1xf32>
    %147 = vector.broadcast %146 : vector<8x1xf32> to vector<8x512xf32>
    %148 = arith.mulf %137, %147 : vector<8x512xf32>
    %149 = vector.broadcast %16 : vector<8x1xf32> to vector<8x512xf32>
    %150 = arith.addf %148, %149 : vector<8x512xf32>
    %151 = vector.extract_strided_slice %150 {offsets = [0, 0], sizes = [8, 256], strides = [1, 1]} : vector<8x512xf32> to vector<8x256xf32>
    %c0_90 = arith.constant 0 : index
    %c0_91 = arith.constant 0 : index
    %c0_92 = arith.constant 0 : index
    %152 = vector.load %arg3[%c0_90, %c0_91, %c0_92] : memref<2x8x256xf32, #tpu.memory_space<vmem>>, vector<1x8x256xf32>
    %153 = vector.shape_cast %152 : vector<1x8x256xf32> to vector<8x256xf32>
    %154 = vector.shape_cast %151 : vector<8x256xf32> to vector<1x8x256xf32>
    tpu.vector_store %arg3[%c0_90, %c0_91, %c0_92], %154 {strides = array<i32>} : memref<2x8x256xf32, #tpu.memory_space<vmem>>, vector<1x8x256xf32>,
    %155 = vector.extract_strided_slice %150 {offsets = [0, 256], sizes = [8, 256], strides = [1, 1]} : vector<8x512xf32> to vector<8x256xf32>
    %c1_93 = arith.constant 1 : index
    %c0_94 = arith.constant 0 : index
    %c0_95 = arith.constant 0 : index
    %156 = vector.load %arg3[%c1_93, %c0_94, %c0_95] : memref<2x8x256xf32, #tpu.memory_space<vmem>>, vector<1x8x256xf32>
    %157 = vector.shape_cast %156 : vector<1x8x256xf32> to vector<8x256xf32>
    %158 = vector.shape_cast %155 : vector<8x256xf32> to vector<1x8x256xf32>
    tpu.vector_store %arg3[%c1_93, %c0_94, %c0_95], %158 {strides = array<i32>} : memref<2x8x256xf32, #tpu.memory_space<vmem>>, vector<1x8x256xf32>,
    return
  }
}

</mosaic_0001>

<llo_original>
// kernel: separable_module_forward.1
$region0: #{separable_module_forward.1}
  #allocation0 [shape = 'u32[]', space=smem, size = 0x4, offset = 0x4, fixed_abs, tag = 'smem constant byte address 0x4 - core index']
  #allocation1 [shape = 'u32[144,128]{1,0:T(1,128)}', space=vmem, size = 0x12000, scoped, tag = 'internal scratch']
  #allocation2 [shape = 'f32[8,512]{1,0:T(8,128)}', space=vmem, size = 0x4000, scoped, tag = 'scratch operand']
  %s0 = inlined_call_operand.vmem [shape: f32[2,4,256], index: 0, kind: input, shape index: {}]
  %s1 = inlined_call_operand.hbm [shape: f32[9,16,512], index: 1, kind: input, shape index: {}]
  %s2 = inlined_call_operand.vmem [shape: f32[8,22], index: 2, kind: input, shape index: {}]
  %s3 = inlined_call_operand.vmem [shape: f32[2,8,256], index: 3, kind: output, shape index: {}]
  %s4 = sld [smem:[#allocation0]]
  $region26: #{separable_module_forward.1} parent=0
    _
  %s6 = ssub.s32 1, %s4
  %s7 = scalar_select 0, %s6, %s4
  $region1: #{separable_module_forward.1} parent=0
    #allocation3 [shape = 'u8[294912]{0}', space=vmem, size = 0x48000, scoped, tag = 'input window, operand 1, single buffered']
    #allocation4 [shape = 's32[1]{0}', space=sflag, size = 0x4, scoped, tag = 'scoped memory for separable_module_forward.1']
    %8 = vsyncpa [#allocation4], 0
    // Predicated region
    $region2: #{separable_module_forward.1} parent=1 // pred_check
      _
    $region3: #{separable_module_forward.1} parent=1 // pred_check_branch
      %10 = sbr.rel (0) target = $region5
    $region4: #{separable_module_forward.1} parent=1 // pred_region
      _
    $region5: #{separable_module_forward.1} parent=1 // pred_fallthru
      _
    // Predicated region
    $region6: #{separable_module_forward.1} parent=1 // pred_check
      _
    $region7: #{separable_module_forward.1} parent=1 // pred_check_branch
      %12 = sbr.rel (0) target = $region9
    $region8: #{separable_module_forward.1} parent=1 // pred_region
      %s14 = ssub.s32 9216, 9216
      %15 = vsyncadd [#allocation4], %s14
      %s16 = sshll.u32 [#allocation3], 4
      %s17 = int_to_ptr.vmem [resolvable:$true] %s16
      %22 = dma.hbm_to_vmem [thread:$0]  %s1, 9216, %s17, [#allocation4], 512, 512, 32
    $region9: #{separable_module_forward.1} parent=1 // pred_fallthru
      _
    // Predicated region
    $region10: #{separable_module_forward.1} parent=1 // pred_check
      _
    $region11: #{separable_module_forward.1} parent=1 // pred_check_branch
      %24 = sbr.rel (0) target = $region13
    $region12: #{separable_module_forward.1} parent=1 // pred_region
      _
    $region13: #{separable_module_forward.1} parent=1 // pred_fallthru
      _
    // Predicated region
    $region14: #{separable_module_forward.1} parent=1 // pred_check
      _
    $region15: #{separable_module_forward.1} parent=1 // pred_check_branch
      %26 = sbr.rel (0) target = $region17
    $region16: #{separable_module_forward.1} parent=1 // pred_region
      %27 = dma.done [#allocation4], 9216
    $region17: #{separable_module_forward.1} parent=1 // pred_fallthru
      _
    %28 = vst [vmem:[#allocation2] sm:$0xff] 0.0
    %29 = vst [vmem:[#allocation2 + $0x8] sm:$0xff] 0.0
    %30 = vst [vmem:[#allocation2 + $0x10] sm:$0xff] 0.0
    %31 = vst [vmem:[#allocation2 + $0x18] sm:$0xff] 0.0
    %v32 = vld [vmem:[%s0] sm:$0xff]
    %v34 = vcombine.high %v32, %v32
    %36 = vst [vmem:[#allocation2] sm:$0xf] %v32
    %37 = vst [vmem:[#allocation2 + $0x8] sm:$0xf] %v34
    %s38 = scalar_lea.vmem %s0, 8
    %v39 = vld [vmem:[%s38] sm:$0xff]
    %v41 = vcombine.high %v39, %v39
    %43 = vst [vmem:[#allocation2 + $0x10] sm:$0xf] %v39
    %44 = vst [vmem:[#allocation2 + $0x18] sm:$0xf] %v41
    %v45 = vld [vmem:[#allocation2] sm:$0xff]
    %v46 = vld [vmem:[#allocation2 + $0x8] sm:$0xff]
    %v47 = vld [vmem:[#allocation2 + $0x10] sm:$0xff]
    %v48 = vld [vmem:[#allocation2 + $0x18] sm:$0xff]
    %v49 = vld [vmem:[%s2] sm:$0xff]
    %s50 = scalar_lea.vmem [#allocation3], 256
    %v51 = vld [vmem:[%s50] sm:$0xff]
    %v52 = vld [vmem:[%s50 + $0x8] sm:$0xff]
    %v53 = vld [vmem:[%s50 + $0x10] sm:$0xff]
    %v54 = vld [vmem:[%s50 + $0x18] sm:$0xff]
    %v55 = vmul.f32 %v45, %v51
    %v56 = vmul.f32 %v46, %v52
    %v57 = vmul.f32 %v47, %v53
    %v58 = vmul.f32 %v48, %v54
    %59 = vrot.lane.b32.xlu0 %v45, 17
    %v60 = vpop.permute.xlu0 %59
    %61 = vrot.lane.b32.xlu0 %v46, 17
    %v62 = vpop.permute.xlu0 %61
    %63 = vrot.lane.b32.xlu0 %v47, 17
    %v64 = vpop.permute.xlu0 %63
    %65 = vrot.lane.b32.xlu0 %v48, 17
    %v66 = vpop.permute.xlu0 %65
    %v67 = vlaneseq
    %v68 = vand.u32 %v67, 127
    %vm69 = vcmp.lt.s32.totalorder %v68, 17
    %v70 = vsel %vm69, %v64, %v66
    %v71 = vsel %vm69, %v62, %v64
    %v72 = vsel %vm69, %v60, %v62
    %v73 = vsel %vm69, %v66, %v60
    %v74 = vld [vmem:[#allocation3] sm:$0xff]
    %v75 = vld [vmem:[#allocation3 + $0x8] sm:$0xff]
    %v76 = vld [vmem:[#allocation3 + $0x10] sm:$0xff]
    %v77 = vld [vmem:[#allocation3 + $0x18] sm:$0xff]
    %v78 = vmul.f32 %v73, %v74
    %v79 = vmul.f32 %v72, %v75
    %v80 = vmul.f32 %v71, %v76
    %v81 = vmul.f32 %v70, %v77
    %v82 = vadd.f32 %v55, %v78
    %v83 = vadd.f32 %v56, %v79
    %v84 = vadd.f32 %v57, %v80
    %v85 = vadd.f32 %v58, %v81
    %86 = vrot.lane.b32.xlu0 %v45, 16
    %v87 = vpop.permute.xlu0 %86
    %88 = vrot.lane.b32.xlu0 %v46, 16
    %v89 = vpop.permute.xlu0 %88
    %90 = vrot.lane.b32.xlu0 %v47, 16
    %v91 = vpop.permute.xlu0 %90
    %92 = vrot.lane.b32.xlu0 %v48, 16
    %v93 = vpop.permute.xlu0 %92
    %vm94 = vcmp.lt.s32.totalorder %v68, 16
    %v95 = vsel %vm94, %v91, %v93
    %v96 = vsel %vm94, %v89, %v91
    %v97 = vsel %vm94, %v87, %v89
    %v98 = vsel %vm94, %v93, %v87
    %s99 = scalar_lea.vmem [#allocation3], 64
    %v100 = vld [vmem:[%s99] sm:$0xff]
    %v101 = vld [vmem:[%s99 + $0x8] sm:$0xff]
    %v102 = vld [vmem:[%s99 + $0x10] sm:$0xff]
    %v103 = vld [vmem:[%s99 + $0x18] sm:$0xff]
    %v104 = vmul.f32 %v98, %v100
    %v105 = vmul.f32 %v97, %v101
    %v106 = vmul.f32 %v96, %v102
    %v107 = vmul.f32 %v95, %v103
    %v108 = vadd.f32 %v82, %v104
    %v109 = vadd.f32 %v83, %v105
    %v110 = vadd.f32 %v84, %v106
    %v111 = vadd.f32 %v85, %v107
    %112 = vrot.lane.b32.xlu0 %v45, 15
    %v113 = vpop.permute.xlu0 %112
    %114 = vrot.lane.b32.xlu0 %v46, 15
    %v115 = vpop.permute.xlu0 %114
    %116 = vrot.lane.b32.xlu0 %v47, 15
    %v117 = vpop.permute.xlu0 %116
    %118 = vrot.lane.b32.xlu0 %v48, 15
    %v119 = vpop.permute.xlu0 %118
    %vm120 = vcmp.lt.s32.totalorder %v68, 15
    %v121 = vsel %vm120, %v117, %v119
    %v122 = vsel %vm120, %v115, %v117
    %v123 = vsel %vm120, %v113, %v115
    %v124 = vsel %vm120, %v119, %v113
    %s125 = scalar_lea.vmem [#allocation3], 128
    %v126 = vld [vmem:[%s125] sm:$0xff]
    %v127 = vld [vmem:[%s125 + $0x8] sm:$0xff]
    %v128 = vld [vmem:[%s125 + $0x10] sm:$0xff]
    %v129 = vld [vmem:[%s125 + $0x18] sm:$0xff]
    %v130 = vmul.f32 %v124, %v126
    %v131 = vmul.f32 %v123, %v127
    %v132 = vmul.f32 %v122, %v128
    %v133 = vmul.f32 %v121, %v129
    %v134 = vadd.f32 %v108, %v130
    %v135 = vadd.f32 %v109, %v131
    %v136 = vadd.f32 %v110, %v132
    %v137 = vadd.f32 %v111, %v133
    %138 = vrot.lane.b32.xlu0 %v45, 1
    %v139 = vpop.permute.xlu0 %138
    %140 = vrot.lane.b32.xlu0 %v46, 1
    %v141 = vpop.permute.xlu0 %140
    %142 = vrot.lane.b32.xlu0 %v47, 1
    %v143 = vpop.permute.xlu0 %142
    %144 = vrot.lane.b32.xlu0 %v48, 1
    %v145 = vpop.permute.xlu0 %144
    %vm146 = vcmp.lt.s32.totalorder %v68, 1
    %v147 = vsel %vm146, %v143, %v145
    %v148 = vsel %vm146, %v141, %v143
    %v149 = vsel %vm146, %v139, %v141
    %v150 = vsel %vm146, %v145, %v139
    %s151 = scalar_lea.vmem [#allocation3], 192
    %v152 = vld [vmem:[%s151] sm:$0xff]
    %v153 = vld [vmem:[%s151 + $0x8] sm:$0xff]
    %v154 = vld [vmem:[%s151 + $0x10] sm:$0xff]
    %v155 = vld [vmem:[%s151 + $0x18] sm:$0xff]
    %v156 = vmul.f32 %v150, %v152
    %v157 = vmul.f32 %v149, %v153
    %v158 = vmul.f32 %v148, %v154
    %v159 = vmul.f32 %v147, %v155
    %v160 = vadd.f32 %v134, %v156
    %v161 = vadd.f32 %v135, %v157
    %v162 = vadd.f32 %v136, %v158
    %v163 = vadd.f32 %v137, %v159
    %164 = vrot.lane.b32.xlu0 %v45, 127
    %v165 = vpop.permute.xlu0 %164
    %166 = vrot.lane.b32.xlu0 %v46, 127
    %v167 = vpop.permute.xlu0 %166
    %168 = vrot.lane.b32.xlu0 %v47, 127
    %v169 = vpop.permute.xlu0 %168
    %170 = vrot.lane.b32.xlu0 %v48, 127
    %v171 = vpop.permute.xlu0 %170
    %vm172 = vcmp.lt.s32.totalorder %v68, 127
    %v173 = vsel %vm172, %v169, %v171
    %v174 = vsel %vm172, %v167, %v169
    %v175 = vsel %vm172, %v165, %v167
    %v176 = vsel %vm172, %v171, %v165
    %s177 = scalar_lea.vmem [#allocation3], 320
    %v178 = vld [vmem:[%s177] sm:$0xff]
    %v179 = vld [vmem:[%s177 + $0x8] sm:$0xff]
    %v180 = vld [vmem:[%s177 + $0x10] sm:$0xff]
    %v181 = vld [vmem:[%s177 + $0x18] sm:$0xff]
    %v182 = vmul.f32 %v175, %v178
    %v183 = vmul.f32 %v174, %v179
    %v184 = vmul.f32 %v173, %v180
    %v185 = vmul.f32 %v176, %v181
    %v186 = vadd.f32 %v160, %v182
    %v187 = vadd.f32 %v161, %v183
    %v188 = vadd.f32 %v162, %v184
    %v189 = vadd.f32 %v163, %v185
    %190 = vrot.lane.b32.xlu0 %v45, 113
    %v191 = vpop.permute.xlu0 %190
    %192 = vrot.lane.b32.xlu0 %v46, 113
    %v193 = vpop.permute.xlu0 %192
    %194 = vrot.lane.b32.xlu0 %v47, 113
    %v195 = vpop.permute.xlu0 %194
    %196 = vrot.lane.b32.xlu0 %v48, 113
    %v197 = vpop.permute.xlu0 %196
    %vm198 = vcmp.lt.s32.totalorder %v68, 113
    %v199 = vsel %vm198, %v195, %v197
    %v200 = vsel %vm198, %v193, %v195
    %v201 = vsel %vm198, %v191, %v193
    %v202 = vsel %vm198, %v197, %v191
    %s203 = scalar_lea.vmem [#allocation3], 384
    %v204 = vld [vmem:[%s203] sm:$0xff]
    %v205 = vld [vmem:[%s203 + $0x8] sm:$0xff]
    %v206 = vld [vmem:[%s203 + $0x10] sm:$0xff]
    %v207 = vld [vmem:[%s203 + $0x18] sm:$0xff]
    %v208 = vmul.f32 %v201, %v204
    %v209 = vmul.f32 %v200, %v205
    %v210 = vmul.f32 %v199, %v206
    %v211 = vmul.f32 %v202, %v207
    %v212 = vadd.f32 %v186, %v208
    %v213 = vadd.f32 %v187, %v209
    %v214 = vadd.f32 %v188, %v210
    %v215 = vadd.f32 %v189, %v211
    %216 = vrot.lane.b32.xlu0 %v45, 112
    %v217 = vpop.permute.xlu0 %216
    %218 = vrot.lane.b32.xlu0 %v46, 112
    %v219 = vpop.permute.xlu0 %218
    %220 = vrot.lane.b32.xlu0 %v47, 112
    %v221 = vpop.permute.xlu0 %220
    %222 = vrot.lane.b32.xlu0 %v48, 112
    %v223 = vpop.permute.xlu0 %222
    %vm224 = vcmp.lt.s32.totalorder %v68, 112
    %v225 = vsel %vm224, %v221, %v223
    %v226 = vsel %vm224, %v219, %v221
    %v227 = vsel %vm224, %v217, %v219
    %v228 = vsel %vm224, %v223, %v217
    %s229 = scalar_lea.vmem [#allocation3], 448
    %v230 = vld [vmem:[%s229] sm:$0xff]
    %v231 = vld [vmem:[%s229 + $0x8] sm:$0xff]
    %v232 = vld [vmem:[%s229 + $0x10] sm:$0xff]
    %v233 = vld [vmem:[%s229 + $0x18] sm:$0xff]
    %v234 = vmul.f32 %v227, %v230
    %v235 = vmul.f32 %v226, %v231
    %v236 = vmul.f32 %v225, %v232
    %v237 = vmul.f32 %v228, %v233
    %v238 = vadd.f32 %v212, %v234
    %v239 = vadd.f32 %v213, %v235
    %v240 = vadd.f32 %v214, %v236
    %v241 = vadd.f32 %v215, %v237
    %242 = vrot.lane.b32.xlu0 %v45, 111
    %v243 = vpop.permute.xlu0 %242
    %244 = vrot.lane.b32.xlu0 %v46, 111
    %v245 = vpop.permute.xlu0 %244
    %246 = vrot.lane.b32.xlu0 %v47, 111
    %v247 = vpop.permute.xlu0 %246
    %248 = vrot.lane.b32.xlu0 %v48, 111
    %v249 = vpop.permute.xlu0 %248
    %vm250 = vcmp.lt.s32.totalorder %v68, 111
    %v251 = vsel %vm250, %v247, %v249
    %v252 = vsel %vm250, %v245, %v247
    %v253 = vsel %vm250, %v243, %v245
    %v254 = vsel %vm250, %v249, %v243
    %s255 = scalar_lea.vmem [#allocation3], 512
    %v256 = vld [vmem:[%s255] sm:$0xff]
    %v257 = vld [vmem:[%s255 + $0x8] sm:$0xff]
    %v258 = vld [vmem:[%s255 + $0x10] sm:$0xff]
    %v259 = vld [vmem:[%s255 + $0x18] sm:$0xff]
    %v260 = vmul.f32 %v253, %v256
    %v261 = vmul.f32 %v252, %v257
    %v262 = vmul.f32 %v251, %v258
    %v263 = vmul.f32 %v254, %v259
    %v264 = vadd.f32 %v238, %v260
    %v265 = vadd.f32 %v239, %v261
    %v266 = vadd.f32 %v240, %v262
    %v267 = vadd.f32 %v241, %v263
    %269 = vset.pattern.permute.xlu0 16
    %270 = vperm.xlu0 %269, %v49
    %v271 = vpop.permute.xlu0 %270
    %vm273 = vcmask 64512
    %v274 = vsel %vm273, %v49, 0
    %276 = vmatprep.subr.mxu0 0.0
    %277 = vmatpush1.msra.mxu0 0.0
    %278 = vmatprep.subr.mxu0 0.0
    %279 = vmatpush1.msra.mxu0 0.0
    %280 = vmatprep.subr.mxu0 0.0
    %281 = vmatpush1.msra.mxu0 0.0
    %282 = vmatprep.subr.mxu0 0.0
    %283 = vmatpush1.msra.mxu0 0.0
    %284 = vmatprep.subr.mxu0 0.0
    %285 = vmatpush1.msra.mxu0 0.0
    %286 = vmatprep.subr.mxu0 0.0
    %287 = vmatpush1.msra.mxu0 0.0
    %288 = vmatprep.subr.mxu0 0.0
    %289 = vmatpush1.msra.mxu0 0.0
    %290 = vmatprep.subr.mxu0 0.0
    %291 = vmatpush1.msra.mxu0 0.0
    %292 = vmatprep.subr.mxu0 0.0
    %293 = vmatpush1.msra.mxu0 0.0
    %294 = vmatprep.subr.mxu0 0.0
    %295 = vmatpush1.msra.mxu0 0.0
    %296 = vmatprep.subr.mxu0 0.0
    %297 = vmatpush1.msra.mxu0 0.0
    %298 = vmatprep.subr.mxu0 0.0
    %299 = vmatpush1.msra.mxu0 0.0
    %300 = vmatprep.subr.mxu0 0.0
    %301 = vmatpush1.msra.mxu0 0.0
    %302 = vmatprep.subr.mxu0 0.0
    %303 = vmatpush1.msra.mxu0 0.0
    %304 = vmatprep.subr.mxu0 0.0
    %305 = vmatpush1.msra.mxu0 0.0
    %306 = vmatprep.subr.mxu0 %v265
    %307 = vmatpush1.msra.mxu0 %v264
    %308 = vmatprep.subr.mxu0 0.0
    %309 = vmatpush2.msra.mxu0 0.0
    %310 = vmatprep.subr.mxu0 0.0
    %311 = vmatpush2.msra.mxu0 0.0
    %312 = vmatprep.subr.mxu0 0.0
    %313 = vmatpush2.msra.mxu0 0.0
    %314 = vmatprep.subr.mxu0 0.0
    %315 = vmatpush2.msra.mxu0 0.0
    %316 = vmatprep.subr.mxu0 0.0
    %317 = vmatpush2.msra.mxu0 0.0
    %318 = vmatprep.subr.mxu0 0.0
    %319 = vmatpush2.msra.mxu0 0.0
    %320 = vmatprep.subr.mxu0 0.0
    %321 = vmatpush2.msra.mxu0 0.0
    %322 = vmatprep.subr.mxu0 0.0
    %323 = vmatpush2.msra.mxu0 0.0
    %324 = vmatprep.subr.mxu0 0.0
    %325 = vmatpush2.msra.mxu0 0.0
    %326 = vmatprep.subr.mxu0 0.0
    %327 = vmatpush2.msra.mxu0 0.0
    %328 = vmatprep.subr.mxu0 0.0
    %329 = vmatpush2.msra.mxu0 0.0
    %330 = vmatprep.subr.mxu0 0.0
    %331 = vmatpush2.msra.mxu0 0.0
    %332 = vmatprep.subr.mxu0 0.0
    %333 = vmatpush2.msra.mxu0 0.0
    %334 = vmatprep.subr.mxu0 0.0
    %335 = vmatpush2.msra.mxu0 0.0
    %336 = vmatprep.subr.mxu0 0.0
    %337 = vmatpush2.msra.mxu0 0.0
    %338 = vmatprep.subr.mxu0 0.0
    %339 = vmatpush2.msra.mxu0 0.0
    %340 = vmatprep.mubr.f32.mxu0 0.0
    %341 = vmatmul.mubr.f32.gmra.mxu0 %v274
    %v342 = vpop.f32.mrf.mxu0
    %v343 = vadd.f32 %v271, %v342
    %v344 = vpop.f32.mrf.mxu0
    %v345 = vadd.f32 %v271, %v344
    %346 = vdwg.mxu0
    %347 = vmatprep.subr.mxu0 0.0
    %348 = vmatpush1.msra.mxu0 0.0
    %349 = vmatprep.subr.mxu0 0.0
    %350 = vmatpush1.msra.mxu0 0.0
    %351 = vmatprep.subr.mxu0 0.0
    %352 = vmatpush1.msra.mxu0 0.0
    %353 = vmatprep.subr.mxu0 0.0
    %354 = vmatpush1.msra.mxu0 0.0
    %355 = vmatprep.subr.mxu0 0.0
    %356 = vmatpush1.msra.mxu0 0.0
    %357 = vmatprep.subr.mxu0 0.0
    %358 = vmatpush1.msra.mxu0 0.0
    %359 = vmatprep.subr.mxu0 0.0
    %360 = vmatpush1.msra.mxu0 0.0
    %361 = vmatprep.subr.mxu0 0.0
    %362 = vmatpush1.msra.mxu0 0.0
    %363 = vmatprep.subr.mxu0 0.0
    %364 = vmatpush1.msra.mxu0 0.0
    %365 = vmatprep.subr.mxu0 0.0
    %366 = vmatpush1.msra.mxu0 0.0
    %367 = vmatprep.subr.mxu0 0.0
    %368 = vmatpush1.msra.mxu0 0.0
    %369 = vmatprep.subr.mxu0 0.0
    %370 = vmatpush1.msra.mxu0 0.0
    %371 = vmatprep.subr.mxu0 0.0
    %372 = vmatpush1.msra.mxu0 0.0
    %373 = vmatprep.subr.mxu0 0.0
    %374 = vmatpush1.msra.mxu0 0.0
    %375 = vmatprep.subr.mxu0 0.0
    %376 = vmatpush1.msra.mxu0 0.0
    %377 = vmatprep.subr.mxu0 %v267
    %378 = vmatpush1.msra.mxu0 %v266
    %379 = vmatprep.subr.mxu0 0.0
    %380 = vmatpush2.msra.mxu0 0.0
    %381 = vmatprep.subr.mxu0 0.0
    %382 = vmatpush2.msra.mxu0 0.0
    %383 = vmatprep.subr.mxu0 0.0
    %384 = vmatpush2.msra.mxu0 0.0
    %385 = vmatprep.subr.mxu0 0.0
    %386 = vmatpush2.msra.mxu0 0.0
    %387 = vmatprep.subr.mxu0 0.0
    %388 = vmatpush2.msra.mxu0 0.0
    %389 = vmatprep.subr.mxu0 0.0
    %390 = vmatpush2.msra.mxu0 0.0
    %391 = vmatprep.subr.mxu0 0.0
    %392 = vmatpush2.msra.mxu0 0.0
    %393 = vmatprep.subr.mxu0 0.0
    %394 = vmatpush2.msra.mxu0 0.0
    %395 = vmatprep.subr.mxu0 0.0
    %396 = vmatpush2.msra.mxu0 0.0
    %397 = vmatprep.subr.mxu0 0.0
    %398 = vmatpush2.msra.mxu0 0.0
    %399 = vmatprep.subr.mxu0 0.0
    %400 = vmatpush2.msra.mxu0 0.0
    %401 = vmatprep.subr.mxu0 0.0
    %402 = vmatpush2.msra.mxu0 0.0
    %403 = vmatprep.subr.mxu0 0.0
    %404 = vmatpush2.msra.mxu0 0.0
    %405 = vmatprep.subr.mxu0 0.0
    %406 = vmatpush2.msra.mxu0 0.0
    %407 = vmatprep.subr.mxu0 0.0
    %408 = vmatpush2.msra.mxu0 0.0
    %409 = vmatprep.subr.mxu0 0.0
    %410 = vmatpush2.msra.mxu0 0.0
    %411 = vmatprep.mubr.f32.mxu0 0.0
    %412 = vmatmul.mubr.f32.gmra.mxu0 %v274
    %v413 = vpop.f32.mrf.mxu0
    %v414 = vadd.f32 %v271, %v413
    %v415 = vpop.f32.mrf.mxu0
    %v416 = vadd.f32 %v271, %v415
    %417 = vdwg.mxu0
    %v418 = vmax.f32 %v343, 0.0
    %v419 = vmax.f32 %v345, 0.0
    %v420 = vmax.f32 %v414, 0.0
    %v421 = vmax.f32 %v416, 0.0
    %v422 = vadd.f32 %v418, %v419
    %v423 = vadd.f32 %v422, %v420
    %v424 = vadd.f32 %v423, %v421
    %425 = vadd.xlane.f32.xlu0 %v424
    %v426 = vpop.xlane.xlu0 %425
    %v427 = vmul.f32 %v426, 0.001953125
    %v428 = vsub.f32 %v418, %v427
    %v429 = vsub.f32 %v419, %v427
    %v430 = vsub.f32 %v420, %v427
    %v431 = vsub.f32 %v421, %v427
    %v432 = vmul.f32 %v428, %v428
    %v433 = vmul.f32 %v429, %v429
    %v434 = vmul.f32 %v430, %v430
    %v435 = vmul.f32 %v431, %v431
    %v436 = vadd.f32 %v432, %v433
    %v437 = vadd.f32 %v436, %v434
    %v438 = vadd.f32 %v437, %v435
    %439 = vadd.xlane.f32.xlu0 %v438
    %v440 = vpop.xlane.xlu0 %439
    %v441 = vmul.f32 %v440, 0.001953125
    %v442 = vadd.f32 %v441, 1e-05
    %v443 = vrsqrt.pop %v442
    %v444 = vmul.f32 %v49, %v443
    %446 = vset.pattern.permute.xlu0 17
    %447 = vperm.xlu0 %446, %v444
    %v448 = vpop.permute.xlu0 %447
    %v450 = vmul.f32 %v428, %v448
    %v451 = vmul.f32 %v429, %v448
    %v452 = vmul.f32 %v430, %v448
    %v453 = vmul.f32 %v431, %v448
    %454 = vset.pattern.permute.xlu0 18
    %455 = vperm.xlu0 %454, %v49
    %v456 = vpop.permute.xlu0 %455
    %v458 = vadd.f32 %v450, %v456
    %v459 = vadd.f32 %v451, %v456
    %v460 = vadd.f32 %v452, %v456
    %v461 = vadd.f32 %v453, %v456
    %v462 = vld [vmem:[%s50 + $0x20] sm:$0xff]
    %v463 = vld [vmem:[%s50 + $0x28] sm:$0xff]
    %v464 = vld [vmem:[%s50 + $0x30] sm:$0xff]
    %v465 = vld [vmem:[%s50 + $0x38] sm:$0xff]
    %v466 = vmul.f32 %v458, %v462
    %v467 = vmul.f32 %v459, %v463
    %v468 = vmul.f32 %v460, %v464
    %v469 = vmul.f32 %v461, %v465
    %470 = vrot.lane.b32.xlu0 %v458, 17
    %v471 = vpop.permute.xlu0 %470
    %472 = vrot.lane.b32.xlu0 %v459, 17
    %v473 = vpop.permute.xlu0 %472
    %474 = vrot.lane.b32.xlu0 %v460, 17
    %v475 = vpop.permute.xlu0 %474
    %476 = vrot.lane.b32.xlu0 %v461, 17
    %v477 = vpop.permute.xlu0 %476
    %v478 = vsel %vm69, %v475, %v477
    %v479 = vsel %vm69, %v473, %v475
    %v480 = vsel %vm69, %v471, %v473
    %v481 = vsel %vm69, %v477, %v471
    %v482 = vld [vmem:[#allocation3 + $0x20] sm:$0xff]
    %v483 = vld [vmem:[#allocation3 + $0x28] sm:$0xff]
    %v484 = vld [vmem:[#allocation3 + $0x30] sm:$0xff]
    %v485 = vld [vmem:[#allocation3 + $0x38] sm:$0xff]
    %v486 = vmul.f32 %v481, %v482
    %v487 = vmul.f32 %v480, %v483
    %v488 = vmul.f32 %v479, %v484
    %v489 = vmul.f32 %v478, %v485
    %v490 = vadd.f32 %v466, %v486
    %v491 = vadd.f32 %v467, %v487
    %v492 = vadd.f32 %v468, %v488
    %v493 = vadd.f32 %v469, %v489
    %494 = vrot.lane.b32.xlu0 %v458, 16
    %v495 = vpop.permute.xlu0 %494
    %496 = vrot.lane.b32.xlu0 %v459, 16
    %v497 = vpop.permute.xlu0 %496
    %498 = vrot.lane.b32.xlu0 %v460, 16
    %v499 = vpop.permute.xlu0 %498
    %500 = vrot.lane.b32.xlu0 %v461, 16
    %v501 = vpop.permute.xlu0 %500
    %v502 = vsel %vm94, %v499, %v501
    %v503 = vsel %vm94, %v497, %v499
    %v504 = vsel %vm94, %v495, %v497
    %v505 = vsel %vm94, %v501, %v495
    %v506 = vld [vmem:[%s99 + $0x20] sm:$0xff]
    %v507 = vld [vmem:[%s99 + $0x28] sm:$0xff]
    %v508 = vld [vmem:[%s99 + $0x30] sm:$0xff]
    %v509 = vld [vmem:[%s99 + $0x38] sm:$0xff]
    %v510 = vmul.f32 %v505, %v506
    %v511 = vmul.f32 %v504, %v507
    %v512 = vmul.f32 %v503, %v508
    %v513 = vmul.f32 %v502, %v509
    %v514 = vadd.f32 %v490, %v510
    %v515 = vadd.f32 %v491, %v511
    %v516 = vadd.f32 %v492, %v512
    %v517 = vadd.f32 %v493, %v513
    %518 = vrot.lane.b32.xlu0 %v458, 15
    %v519 = vpop.permute.xlu0 %518
    %520 = vrot.lane.b32.xlu0 %v459, 15
    %v521 = vpop.permute.xlu0 %520
    %522 = vrot.lane.b32.xlu0 %v460, 15
    %v523 = vpop.permute.xlu0 %522
    %524 = vrot.lane.b32.xlu0 %v461, 15
    %v525 = vpop.permute.xlu0 %524
    %v526 = vsel %vm120, %v523, %v525
    %v527 = vsel %vm120, %v521, %v523
    %v528 = vsel %vm120, %v519, %v521
    %v529 = vsel %vm120, %v525, %v519
    %v530 = vld [vmem:[%s125 + $0x20] sm:$0xff]
    %v531 = vld [vmem:[%s125 + $0x28] sm:$0xff]
    %v532 = vld [vmem:[%s125 + $0x30] sm:$0xff]
    %v533 = vld [vmem:[%s125 + $0x38] sm:$0xff]
    %v534 = vmul.f32 %v529, %v530
    %v535 = vmul.f32 %v528, %v531
    %v536 = vmul.f32 %v527, %v532
    %v537 = vmul.f32 %v526, %v533
    %v538 = vadd.f32 %v514, %v534
    %v539 = vadd.f32 %v515, %v535
    %v540 = vadd.f32 %v516, %v536
    %v541 = vadd.f32 %v517, %v537
    %542 = vrot.lane.b32.xlu0 %v458, 1
    %v543 = vpop.permute.xlu0 %542
    %544 = vrot.lane.b32.xlu0 %v459, 1
    %v545 = vpop.permute.xlu0 %544
    %546 = vrot.lane.b32.xlu0 %v460, 1
    %v547 = vpop.permute.xlu0 %546
    %548 = vrot.lane.b32.xlu0 %v461, 1
    %v549 = vpop.permute.xlu0 %548
    %v550 = vsel %vm146, %v547, %v549
    %v551 = vsel %vm146, %v545, %v547
    %v552 = vsel %vm146, %v543, %v545
    %v553 = vsel %vm146, %v549, %v543
    %v554 = vld [vmem:[%s151 + $0x20] sm:$0xff]
    %v555 = vld [vmem:[%s151 + $0x28] sm:$0xff]
    %v556 = vld [vmem:[%s151 + $0x30] sm:$0xff]
    %v557 = vld [vmem:[%s151 + $0x38] sm:$0xff]
    %v558 = vmul.f32 %v553, %v554
    %v559 = vmul.f32 %v552, %v555
    %v560 = vmul.f32 %v551, %v556
    %v561 = vmul.f32 %v550, %v557
    %v562 = vadd.f32 %v538, %v558
    %v563 = vadd.f32 %v539, %v559
    %v564 = vadd.f32 %v540, %v560
    %v565 = vadd.f32 %v541, %v561
    %566 = vrot.lane.b32.xlu0 %v458, 127
    %v567 = vpop.permute.xlu0 %566
    %568 = vrot.lane.b32.xlu0 %v459, 127
    %v569 = vpop.permute.xlu0 %568
    %570 = vrot.lane.b32.xlu0 %v460, 127
    %v571 = vpop.permute.xlu0 %570
    %572 = vrot.lane.b32.xlu0 %v461, 127
    %v573 = vpop.permute.xlu0 %572
    %v574 = vsel %vm172, %v571, %v573
    %v575 = vsel %vm172, %v569, %v571
    %v576 = vsel %vm172, %v567, %v569
    %v577 = vsel %vm172, %v573, %v567
    %v578 = vld [vmem:[%s177 + $0x20] sm:$0xff]
    %v579 = vld [vmem:[%s177 + $0x28] sm:$0xff]
    %v580 = vld [vmem:[%s177 + $0x30] sm:$0xff]
    %v581 = vld [vmem:[%s177 + $0x38] sm:$0xff]
    %v582 = vmul.f32 %v576, %v578
    %v583 = vmul.f32 %v575, %v579
    %v584 = vmul.f32 %v574, %v580
    %v585 = vmul.f32 %v577, %v581
    %v586 = vadd.f32 %v562, %v582
    %v587 = vadd.f32 %v563, %v583
    %v588 = vadd.f32 %v564, %v584
    %v589 = vadd.f32 %v565, %v585
    %590 = vrot.lane.b32.xlu0 %v458, 113
    %v591 = vpop.permute.xlu0 %590
    %592 = vrot.lane.b32.xlu0 %v459, 113
    %v593 = vpop.permute.xlu0 %592
    %594 = vrot.lane.b32.xlu0 %v460, 113
    %v595 = vpop.permute.xlu0 %594
    %596 = vrot.lane.b32.xlu0 %v461, 113
    %v597 = vpop.permute.xlu0 %596
    %v598 = vsel %vm198, %v595, %v597
    %v599 = vsel %vm198, %v593, %v595
    %v600 = vsel %vm198, %v591, %v593
    %v601 = vsel %vm198, %v597, %v591
    %v602 = vld [vmem:[%s203 + $0x20] sm:$0xff]
    %v603 = vld [vmem:[%s203 + $0x28] sm:$0xff]
    %v604 = vld [vmem:[%s203 + $0x30] sm:$0xff]
    %v605 = vld [vmem:[%s203 + $0x38] sm:$0xff]
    %v606 = vmul.f32 %v600, %v602
    %v607 = vmul.f32 %v599, %v603
    %v608 = vmul.f32 %v598, %v604
    %v609 = vmul.f32 %v601, %v605
    %v610 = vadd.f32 %v586, %v606
    %v611 = vadd.f32 %v587, %v607
    %v612 = vadd.f32 %v588, %v608
    %v613 = vadd.f32 %v589, %v609
    %614 = vrot.lane.b32.xlu0 %v458, 112
    %v615 = vpop.permute.xlu0 %614
    %616 = vrot.lane.b32.xlu0 %v459, 112
    %v617 = vpop.permute.xlu0 %616
    %618 = vrot.lane.b32.xlu0 %v460, 112
    %v619 = vpop.permute.xlu0 %618
    %620 = vrot.lane.b32.xlu0 %v461, 112
    %v621 = vpop.permute.xlu0 %620
    %v622 = vsel %vm224, %v619, %v621
    %v623 = vsel %vm224, %v617, %v619
    %v624 = vsel %vm224, %v615, %v617
    %v625 = vsel %vm224, %v621, %v615
    %v626 = vld [vmem:[%s229 + $0x20] sm:$0xff]
    %v627 = vld [vmem:[%s229 + $0x28] sm:$0xff]
    %v628 = vld [vmem:[%s229 + $0x30] sm:$0xff]
    %v629 = vld [vmem:[%s229 + $0x38] sm:$0xff]
    %v630 = vmul.f32 %v624, %v626
    %v631 = vmul.f32 %v623, %v627
    %v632 = vmul.f32 %v622, %v628
    %v633 = vmul.f32 %v625, %v629
    %v634 = vadd.f32 %v610, %v630
    %v635 = vadd.f32 %v611, %v631
    %v636 = vadd.f32 %v612, %v632
    %v637 = vadd.f32 %v613, %v633
    %638 = vrot.lane.b32.xlu0 %v458, 111
    %v639 = vpop.permute.xlu0 %638
    %640 = vrot.lane.b32.xlu0 %v459, 111
    %v641 = vpop.permute.xlu0 %640
    %642 = vrot.lane.b32.xlu0 %v460, 111
    %v643 = vpop.permute.xlu0 %642
    %644 = vrot.lane.b32.xlu0 %v461, 111
    %v645 = vpop.permute.xlu0 %644
    %v646 = vsel %vm250, %v643, %v645
    %v647 = vsel %vm250, %v641, %v643
    %v648 = vsel %vm250, %v639, %v641
    %v649 = vsel %vm250, %v645, %v639
    %v650 = vld [vmem:[%s255 + $0x20] sm:$0xff]
    %v651 = vld [vmem:[%s255 + $0x28] sm:$0xff]
    %v652 = vld [vmem:[%s255 + $0x30] sm:$0xff]
    %v653 = vld [vmem:[%s255 + $0x38] sm:$0xff]
    %v654 = vmul.f32 %v648, %v650
    %v655 = vmul.f32 %v647, %v651
    %v656 = vmul.f32 %v646, %v652
    %v657 = vmul.f32 %v649, %v653
    %v658 = vadd.f32 %v634, %v654
    %v659 = vadd.f32 %v635, %v655
    %v660 = vadd.f32 %v636, %v656
    %v661 = vadd.f32 %v637, %v657
    %662 = vset.pattern.permute.xlu0 19
    %663 = vperm.xlu0 %662, %v49
    %v664 = vpop.permute.xlu0 %663
    %666 = vrot.lane.b32.xlu0 %v49, 120
    %v667 = vpop.permute.xlu0 %666
    %v668 = vsel %vm273, %v667, 0
    %670 = vmatprep.subr.mxu0 0.0
    %671 = vmatpush1.msra.mxu0 0.0
    %672 = vmatprep.subr.mxu0 0.0
    %673 = vmatpush1.msra.mxu0 0.0
    %674 = vmatprep.subr.mxu0 0.0
    %675 = vmatpush1.msra.mxu0 0.0
    %676 = vmatprep.subr.mxu0 0.0
    %677 = vmatpush1.msra.mxu0 0.0
    %678 = vmatprep.subr.mxu0 0.0
    %679 = vmatpush1.msra.mxu0 0.0
    %680 = vmatprep.subr.mxu0 0.0
    %681 = vmatpush1.msra.mxu0 0.0
    %682 = vmatprep.subr.mxu0 0.0
    %683 = vmatpush1.msra.mxu0 0.0
    %684 = vmatprep.subr.mxu0 0.0
    %685 = vmatpush1.msra.mxu0 0.0
    %686 = vmatprep.subr.mxu0 0.0
    %687 = vmatpush1.msra.mxu0 0.0
    %688 = vmatprep.subr.mxu0 0.0
    %689 = vmatpush1.msra.mxu0 0.0
    %690 = vmatprep.subr.mxu0 0.0
    %691 = vmatpush1.msra.mxu0 0.0
    %692 = vmatprep.subr.mxu0 0.0
    %693 = vmatpush1.msra.mxu0 0.0
    %694 = vmatprep.subr.mxu0 0.0
    %695 = vmatpush1.msra.mxu0 0.0
    %696 = vmatprep.subr.mxu0 0.0
    %697 = vmatpush1.msra.mxu0 0.0
    %698 = vmatprep.subr.mxu0 0.0
    %699 = vmatpush1.msra.mxu0 0.0
    %700 = vmatprep.subr.mxu0 %v659
    %701 = vmatpush1.msra.mxu0 %v658
    %702 = vmatprep.subr.mxu0 0.0
    %703 = vmatpush2.msra.mxu0 0.0
    %704 = vmatprep.subr.mxu0 0.0
    %705 = vmatpush2.msra.mxu0 0.0
    %706 = vmatprep.subr.mxu0 0.0
    %707 = vmatpush2.msra.mxu0 0.0
    %708 = vmatprep.subr.mxu0 0.0
    %709 = vmatpush2.msra.mxu0 0.0
    %710 = vmatprep.subr.mxu0 0.0
    %711 = vmatpush2.msra.mxu0 0.0
    %712 = vmatprep.subr.mxu0 0.0
    %713 = vmatpush2.msra.mxu0 0.0
    %714 = vmatprep.subr.mxu0 0.0
    %715 = vmatpush2.msra.mxu0 0.0
    %716 = vmatprep.subr.mxu0 0.0
    %717 = vmatpush2.msra.mxu0 0.0
    %718 = vmatprep.subr.mxu0 0.0
    %719 = vmatpush2.msra.mxu0 0.0
    %720 = vmatprep.subr.mxu0 0.0
    %721 = vmatpush2.msra.mxu0 0.0
    %722 = vmatprep.subr.mxu0 0.0
    %723 = vmatpush2.msra.mxu0 0.0
    %724 = vmatprep.subr.mxu0 0.0
    %725 = vmatpush2.msra.mxu0 0.0
    %726 = vmatprep.subr.mxu0 0.0
    %727 = vmatpush2.msra.mxu0 0.0
    %728 = vmatprep.subr.mxu0 0.0
    %729 = vmatpush2.msra.mxu0 0.0
    %730 = vmatprep.subr.mxu0 0.0
    %731 = vmatpush2.msra.mxu0 0.0
    %732 = vmatprep.subr.mxu0 0.0
    %733 = vmatpush2.msra.mxu0 0.0
    %734 = vmatprep.mubr.f32.mxu0 0.0
    %735 = vmatmul.mubr.f32.gmra.mxu0 %v668
    %v736 = vpop.f32.mrf.mxu0
    %v737 = vadd.f32 %v664, %v736
    %v738 = vpop.f32.mrf.mxu0
    %v739 = vadd.f32 %v664, %v738
    %740 = vdwg.mxu0
    %741 = vmatprep.subr.mxu0 0.0
    %742 = vmatpush1.msra.mxu0 0.0
    %743 = vmatprep.subr.mxu0 0.0
    %744 = vmatpush1.msra.mxu0 0.0
    %745 = vmatprep.subr.mxu0 0.0
    %746 = vmatpush1.msra.mxu0 0.0
    %747 = vmatprep.subr.mxu0 0.0
    %748 = vmatpush1.msra.mxu0 0.0
    %749 = vmatprep.subr.mxu0 0.0
    %750 = vmatpush1.msra.mxu0 0.0
    %751 = vmatprep.subr.mxu0 0.0
    %752 = vmatpush1.msra.mxu0 0.0
    %753 = vmatprep.subr.mxu0 0.0
    %754 = vmatpush1.msra.mxu0 0.0
    %755 = vmatprep.subr.mxu0 0.0
    %756 = vmatpush1.msra.mxu0 0.0
    %757 = vmatprep.subr.mxu0 0.0
    %758 = vmatpush1.msra.mxu0 0.0
    %759 = vmatprep.subr.mxu0 0.0
    %760 = vmatpush1.msra.mxu0 0.0
    %761 = vmatprep.subr.mxu0 0.0
    %762 = vmatpush1.msra.mxu0 0.0
    %763 = vmatprep.subr.mxu0 0.0
    %764 = vmatpush1.msra.mxu0 0.0
    %765 = vmatprep.subr.mxu0 0.0
    %766 = vmatpush1.msra.mxu0 0.0
    %767 = vmatprep.subr.mxu0 0.0
    %768 = vmatpush1.msra.mxu0 0.0
    %769 = vmatprep.subr.mxu0 0.0
    %770 = vmatpush1.msra.mxu0 0.0
    %771 = vmatprep.subr.mxu0 %v661
    %772 = vmatpush1.msra.mxu0 %v660
    %773 = vmatprep.subr.mxu0 0.0
    %774 = vmatpush2.msra.mxu0 0.0
    %775 = vmatprep.subr.mxu0 0.0
    %776 = vmatpush2.msra.mxu0 0.0
    %777 = vmatprep.subr.mxu0 0.0
    %778 = vmatpush2.msra.mxu0 0.0
    %779 = vmatprep.subr.mxu0 0.0
    %780 = vmatpush2.msra.mxu0 0.0
    %781 = vmatprep.subr.mxu0 0.0
    %782 = vmatpush2.msra.mxu0 0.0
    %783 = vmatprep.subr.mxu0 0.0
    %784 = vmatpush2.msra.mxu0 0.0
    %785 = vmatprep.subr.mxu0 0.0
    %786 = vmatpush2.msra.mxu0 0.0
    %787 = vmatprep.subr.mxu0 0.0
    %788 = vmatpush2.msra.mxu0 0.0
    %789 = vmatprep.subr.mxu0 0.0
    %790 = vmatpush2.msra.mxu0 0.0
    %791 = vmatprep.subr.mxu0 0.0
    %792 = vmatpush2.msra.mxu0 0.0
    %793 = vmatprep.subr.mxu0 0.0
    %794 = vmatpush2.msra.mxu0 0.0
    %795 = vmatprep.subr.mxu0 0.0
    %796 = vmatpush2.msra.mxu0 0.0
    %797 = vmatprep.subr.mxu0 0.0
    %798 = vmatpush2.msra.mxu0 0.0
    %799 = vmatprep.subr.mxu0 0.0
    %800 = vmatpush2.msra.mxu0 0.0
    %801 = vmatprep.subr.mxu0 0.0
    %802 = vmatpush2.msra.mxu0 0.0
    %803 = vmatprep.subr.mxu0 0.0
    %804 = vmatpush2.msra.mxu0 0.0
    %805 = vmatprep.mubr.f32.mxu0 0.0
    %806 = vmatmul.mubr.f32.gmra.mxu0 %v668
    %v807 = vpop.f32.mrf.mxu0
    %v808 = vadd.f32 %v664, %v807
    %v809 = vpop.f32.mrf.mxu0
    %v810 = vadd.f32 %v664, %v809
    %811 = vdwg.mxu0
    %v812 = vmax.f32 %v737, 0.0
    %v813 = vmax.f32 %v739, 0.0
    %v814 = vmax.f32 %v808, 0.0
    %v815 = vmax.f32 %v810, 0.0
    %v816 = vadd.f32 %v812, %v813
    %v817 = vadd.f32 %v816, %v814
    %v818 = vadd.f32 %v817, %v815
    %819 = vadd.xlane.f32.xlu0 %v818
    %v820 = vpop.xlane.xlu0 %819
    %v821 = vmul.f32 %v820, 0.001953125
    %v822 = vsub.f32 %v812, %v821
    %v823 = vsub.f32 %v813, %v821
    %v824 = vsub.f32 %v814, %v821
    %v825 = vsub.f32 %v815, %v821
    %v826 = vmul.f32 %v822, %v822
    %v827 = vmul.f32 %v823, %v823
    %v828 = vmul.f32 %v824, %v824
    %v829 = vmul.f32 %v825, %v825
    %v830 = vadd.f32 %v826, %v827
    %v831 = vadd.f32 %v830, %v828
    %v832 = vadd.f32 %v831, %v829
    %833 = vadd.xlane.f32.xlu0 %v832
    %v834 = vpop.xlane.xlu0 %833
    %v835 = vmul.f32 %v834, 0.001953125
    %v836 = vadd.f32 %v835, 1e-05
    %v837 = vrsqrt.pop %v836
    %v838 = vmul.f32 %v49, %v837
    %840 = vset.pattern.permute.xlu0 20
    %841 = vperm.xlu0 %840, %v838
    %v842 = vpop.permute.xlu0 %841
    %v844 = vmul.f32 %v822, %v842
    %v845 = vmul.f32 %v823, %v842
    %v846 = vmul.f32 %v824, %v842
    %v847 = vmul.f32 %v825, %v842
    %848 = vset.pattern.permute.xlu0 21
    %849 = vperm.xlu0 %848, %v49
    %v850 = vpop.permute.xlu0 %849
    %v852 = vadd.f32 %v844, %v850
    %v853 = vadd.f32 %v845, %v850
    %v854 = vadd.f32 %v846, %v850
    %v855 = vadd.f32 %v847, %v850
    %856 = vst [vmem:[%s3] sm:$0xff] %v852
    %857 = vst [vmem:[%s3 + $0x8] sm:$0xff] %v853
    %s858 = scalar_lea.vmem %s3, 16
    %859 = vst [vmem:[%s858] sm:$0xff] %v854
    %860 = vst [vmem:[%s858 + $0x8] sm:$0xff] %v855
    // Predicated region
    $region18: #{separable_module_forward.1} parent=1 // pred_check
      _
    $region19: #{separable_module_forward.1} parent=1 // pred_check_branch
      %862 = sbr.rel (0) target = $region21
    $region20: #{separable_module_forward.1} parent=1 // pred_region
      _
    $region21: #{separable_module_forward.1} parent=1 // pred_fallthru
      _
    // Predicated region
    $region22: #{separable_module_forward.1} parent=1 // pred_check
      _
    $region23: #{separable_module_forward.1} parent=1 // pred_check_branch
      %864 = sbr.rel (0) target = $region25
    $region24: #{separable_module_forward.1} parent=1 // pred_region
      _
    $region25: #{separable_module_forward.1} parent=1 // pred_fallthru
      _
    %865 = vsyncpa [#allocation4], 1

</llo_original>
